<compile_context>
chip_gen: v7x
topology: tpu7x:2x2x1
jax: 0.10.0
libtpu: 0.0.40
codegen_flags: <defaults>
</compile_context>

<pallas_src>
import jax
import jax.numpy as jnp
from jax.experimental import pallas as pl
from jax.experimental.pallas import tpu as pltpu


# ----------------------------- Pallas kernel -------------------------------

def _layer_kinds(n_layers, use_linear_projection):
    # "bn"  -> Linear (no bias needed) -> BatchNorm1d -> ReLU
    # "lin" -> Linear (with bias)
    if use_linear_projection:
        return ["lin"] * n_layers
    return ["bn"] * (n_layers - 1) + ["lin"]


def _make_autoencoder_kernel(enc_kinds, dec_kinds):
    """Builds a fused kernel for a fixed (static) layer structure."""

    def _n_refs(kinds):
        return sum(3 if k == "bn" else 2 for k in kinds)

    n_in = 1 + _n_refs(enc_kinds) + _n_refs(dec_kinds)

    def kernel(*refs):
        in_refs = refs[:n_in]
        hidden_ref, xrec_ref = refs[n_in], refs[n_in + 1]

        h = in_refs[0][...].astype(jnp.float32)

        def run_stack(h, kinds, pos):
            for k in kinds:
                if k == "bn":
                    w = in_refs[pos][...]        # (din, dout)
                    g = in_refs[pos + 1][...]    # (1, dout)
                    beta = in_refs[pos + 2][...]  # (1, dout)
                    pos += 3
                    # Linear without bias: the bias is exactly cancelled by
                    # the BatchNorm mean subtraction.
                    y = jnp.dot(h, w, preferred_element_type=jnp.float32)
                    mean = jnp.mean(y, axis=0, keepdims=True)
                    var = jnp.mean((y - mean) * (y - mean), axis=0,
                                   keepdims=True)
                    s = g * jax.lax.rsqrt(var + 1e-5)   # (1, dout)
                    t = beta - mean * s                  # (1, dout)
                    h = jnp.maximum(y * s + t, 0.0)
                else:  # plain Linear (with bias)
                    w = in_refs[pos][...]        # (din, dout)
                    b = in_refs[pos + 1][...]    # (1, dout)
                    pos += 2
                    h = jnp.dot(h, w, preferred_element_type=jnp.float32) + b
            return h, pos

        pos = 1
        h, pos = run_stack(h, enc_kinds, pos)
        hidden_ref[...] = h.astype(hidden_ref.dtype)

        r, pos = run_stack(h, dec_kinds, pos)
        # Decoder ends with Sigmoid.
        xrec_ref[...] = (1.0 / (1.0 + jnp.exp(-r))).astype(xrec_ref.dtype)

    return kernel


def _full_spec(shape):
    # Whole array as a single block (block shape == array shape satisfies the
    # TPU tiling constraint at these small sizes).
    return pl.BlockSpec(shape, lambda: tuple(0 for _ in shape))


def autoencoder_forward(enc_params, dec_params, x,
                        use_linear_projection=False):
    """Fused forward: returns (hidden, x_rec), both float32."""
    B, D = x.shape
    F = enc_params[-1]["w_t"].shape[1]

    enc_kinds = _layer_kinds(len(enc_params), use_linear_projection)
    dec_kinds = _layer_kinds(len(dec_params), use_linear_projection)

    inputs = [x]
    for params, kinds in ((enc_params, enc_kinds), (dec_params, dec_kinds)):
        for layer, k in zip(params, kinds):
            if k == "bn":
                inputs.extend([layer["w_t"], layer["gamma"], layer["beta"]])
            else:
                inputs.extend([layer["w_t"], layer["b"]])

    kernel = _make_autoencoder_kernel(enc_kinds, dec_kinds)

    hidden, x_rec = pl.pallas_call(
        kernel,
        out_shape=(jax.ShapeDtypeStruct((B, F), jnp.float32),
                   jax.ShapeDtypeStruct((B, D), jnp.float32)),
        in_specs=[_full_spec(a.shape) for a in inputs],
        out_specs=(_full_spec((B, F)), _full_spec((B, D))),
    )(*inputs)
    return hidden, x_rec


# ----------------------------- parameter setup -----------------------------

def init_mlp_params(key, dims, use_linear_projection=False):
    """Synthetic init matching nn.Linear shapes/init for a Linear stack.

    dims = [in, mid..., out].  BN layers get gamma=1, beta=0 (fresh
    nn.BatchNorm1d).  Bias is generated for every Linear (as PyTorch does)
    and kept in the reference; the kernel skips it for BN layers.
    """
    params = []
    for i in range(len(dims) - 1):
        key, kw, kb = jax.random.split(key, 3)
        fan_in, fan_out = dims[i], dims[i + 1]
        bound = 1.0 / jnp.sqrt(fan_in)
        w = jax.random.uniform(kw, (fan_out, fan_in), jnp.float32,
                               -bound, bound)
        b = jax.random.uniform(kb, (fan_out,), jnp.float32, -bound, bound)
        layer = {"w_t": w.T, "b": b.reshape(1, fan_out)}
        is_last = i == len(dims) - 2
        if (not is_last) and (not use_linear_projection):
            layer["gamma"] = jnp.ones((1, fan_out), jnp.float32)
            layer["beta"] = jnp.zeros((1, fan_out), jnp.float32)
        params.append(layer)
    return params


# ------------------------------- reference ---------------------------------

def _stack_ref(params, x, use_linear_projection=False):
    h = x
    for i, layer in enumerate(params):
        is_last = i == len(params) - 1
        y = h @ layer["w_t"] + layer["b"]     # bias included in the reference
        if is_last or use_linear_projection:
            h = y
        else:
            mean = jnp.mean(y, axis=0, keepdims=True)
            var = jnp.mean((y - mean) ** 2, axis=0, keepdims=True)
            yhat = (y - mean) / jnp.sqrt(var + 1e-5)
            h = jnp.maximum(yhat * layer["gamma"] + layer["beta"], 0.0)
    return h


def _autoencoder_ref(enc_params, dec_params, x, use_linear_projection=False):
    hidden = _stack_ref(enc_params, x, use_linear_projection)
    x_rec = _stack_ref(dec_params, hidden, use_linear_projection)
    x_rec = 1.0 / (1.0 + jnp.exp(-x_rec))
    return hidden, x_rec


# --------------------------------- main -------------------------------------

if __name__ == "__main__":
    key = jax.random.PRNGKey(0)

    # Small synthetic config consistent with AutoEncoder (default dims /8):
    batch = 8
    input_dim = 32
    feature_dim = 16
    middle_dims = (128, 64, 32)
    use_linear_projection = False

    enc_dims = [input_dim] + list(middle_dims) + [feature_dim]
    dec_dims = [feature_dim] + list(middle_dims[::-1]) + [input_dim]

    key, k_enc, k_dec, k_x = jax.random.split(key, 4)
    enc_params = init_mlp_params(k_enc, enc_dims, use_linear_projection)
    dec_params = init_mlp_params(k_dec, dec_dims, use_linear_projection)
    x = jax.random.normal(k_x, (batch, input_dim), jnp.float32)

    hidden, x_rec = autoencoder_forward(enc_params, dec_params, x,
                                        use_linear_projection)
    hidden = jax.block_until_ready(hidden)
    x_rec = jax.block_until_ready(x_rec)

    # Sanity check against a pure-JAX reference.
    h_ref, r_ref = _autoencoder_ref(enc_params, dec_params, x,
                                    use_linear_projection)
    ok = hidden.shape == (batch, feature_dim)
    ok = ok and x_rec.shape == (batch, input_dim)
    ok = ok and bool(jnp.allclose(hidden, h_ref, atol=1e-4, rtol=1e-4))
    ok = ok and bool(jnp.allclose(x_rec, r_ref, atol=1e-4, rtol=1e-4))

    if ok:
        print("KERNEL_OK")
    else:
        print("KERNEL_MISMATCH")
</pallas_src>

<mosaic_0001>
module attributes {stable_mosaic.version = 11 : i64} {
  func.func @kernel(%arg0: memref<8x32xf32, #tpu.memory_space<vmem>>, %arg1: memref<32x128xf32, #tpu.memory_space<vmem>>, %arg2: memref<1x128xf32, #tpu.memory_space<vmem>>, %arg3: memref<1x128xf32, #tpu.memory_space<vmem>>, %arg4: memref<128x64xf32, #tpu.memory_space<vmem>>, %arg5: memref<1x64xf32, #tpu.memory_space<vmem>>, %arg6: memref<1x64xf32, #tpu.memory_space<vmem>>, %arg7: memref<64x32xf32, #tpu.memory_space<vmem>>, %arg8: memref<1x32xf32, #tpu.memory_space<vmem>>, %arg9: memref<1x32xf32, #tpu.memory_space<vmem>>, %arg10: memref<32x16xf32, #tpu.memory_space<vmem>>, %arg11: memref<1x16xf32, #tpu.memory_space<vmem>>, %arg12: memref<16x32xf32, #tpu.memory_space<vmem>>, %arg13: memref<1x32xf32, #tpu.memory_space<vmem>>, %arg14: memref<1x32xf32, #tpu.memory_space<vmem>>, %arg15: memref<32x64xf32, #tpu.memory_space<vmem>>, %arg16: memref<1x64xf32, #tpu.memory_space<vmem>>, %arg17: memref<1x64xf32, #tpu.memory_space<vmem>>, %arg18: memref<64x128xf32, #tpu.memory_space<vmem>>, %arg19: memref<1x128xf32, #tpu.memory_space<vmem>>, %arg20: memref<1x128xf32, #tpu.memory_space<vmem>>, %arg21: memref<128x32xf32, #tpu.memory_space<vmem>>, %arg22: memref<1x32xf32, #tpu.memory_space<vmem>>, %arg23: memref<8x16xf32, #tpu.memory_space<vmem>>, %arg24: memref<8x32xf32, #tpu.memory_space<vmem>>) attributes {dimension_semantics = [], scalar_prefetch = 0 : i64, scratch_operands = 0 : i64, tpu.core_type = #tpu.core_type<tc>} {
    %c0 = arith.constant 0 : index
    %c0_0 = arith.constant 0 : index
    %0 = vector.load %arg0[%c0, %c0_0] : memref<8x32xf32, #tpu.memory_space<vmem>>, vector<8x32xf32>
    %c0_1 = arith.constant 0 : index
    %c0_2 = arith.constant 0 : index
    %1 = vector.load %arg1[%c0_1, %c0_2] : memref<32x128xf32, #tpu.memory_space<vmem>>, vector<32x128xf32>
    %c0_3 = arith.constant 0 : index
    %c0_4 = arith.constant 0 : index
    %2 = vector.load %arg2[%c0_3, %c0_4] : memref<1x128xf32, #tpu.memory_space<vmem>>, vector<1x128xf32>
    %c0_5 = arith.constant 0 : index
    %c0_6 = arith.constant 0 : index
    %3 = vector.load %arg3[%c0_5, %c0_6] : memref<1x128xf32, #tpu.memory_space<vmem>>, vector<1x128xf32>
    %cst = arith.constant dense<0.000000e+00> : vector<8x128xf32>
    %4 = tpu.matmul %0, %1, %cst {dimension_numbers = #tpu.dot_dimension_numbers<[1], [0], [0], [1], [0, 0, 1, 1], [], []>} : vector<8x32xf32>, vector<32x128xf32>, vector<8x128xf32> -> vector<8x128xf32>
    %cst_7 = arith.constant dense<0.000000e+00> : vector<128xf32>
    %5 = vector.multi_reduction <add>, %4, %cst_7 [0] : vector<8x128xf32> to vector<128xf32>
    %6 = vector.shape_cast %5 : vector<128xf32> to vector<1x128xf32>
    %cst_8 = arith.constant 8.000000e+00 : f32
    %7 = vector.broadcast %cst_8 : f32 to vector<1x128xf32>
    %8 = arith.divf %6, %7 : vector<1x128xf32>
    %9 = vector.broadcast %8 : vector<1x128xf32> to vector<8x128xf32>
    %10 = arith.subf %4, %9 : vector<8x128xf32>
    %11 = vector.broadcast %8 : vector<1x128xf32> to vector<8x128xf32>
    %12 = arith.subf %4, %11 : vector<8x128xf32>
    %13 = arith.mulf %10, %12 : vector<8x128xf32>
    %cst_9 = arith.constant dense<0.000000e+00> : vector<128xf32>
    %14 = vector.multi_reduction <add>, %13, %cst_9 [0] : vector<8x128xf32> to vector<128xf32>
    %15 = vector.shape_cast %14 : vector<128xf32> to vector<1x128xf32>
    %cst_10 = arith.constant 8.000000e+00 : f32
    %16 = vector.broadcast %cst_10 : f32 to vector<1x128xf32>
    %17 = arith.divf %15, %16 : vector<1x128xf32>
    %cst_11 = arith.constant 9.99999974E-6 : f32
    %18 = vector.broadcast %cst_11 : f32 to vector<1x128xf32>
    %19 = arith.addf %17, %18 : vector<1x128xf32>
    %20 = math.rsqrt %19 : vector<1x128xf32>
    %21 = arith.mulf %2, %20 : vector<1x128xf32>
    %22 = arith.mulf %8, %21 : vector<1x128xf32>
    %23 = arith.subf %3, %22 : vector<1x128xf32>
    %24 = vector.broadcast %21 : vector<1x128xf32> to vector<8x128xf32>
    %25 = arith.mulf %4, %24 : vector<8x128xf32>
    %26 = vector.broadcast %23 : vector<1x128xf32> to vector<8x128xf32>
    %27 = arith.addf %25, %26 : vector<8x128xf32>
    %cst_12 = arith.constant 0.000000e+00 : f32
    %28 = vector.broadcast %cst_12 : f32 to vector<8x128xf32>
    %29 = arith.maximumf %27, %28 : vector<8x128xf32>
    %c0_13 = arith.constant 0 : index
    %c0_14 = arith.constant 0 : index
    %30 = vector.load %arg4[%c0_13, %c0_14] : memref<128x64xf32, #tpu.memory_space<vmem>>, vector<128x64xf32>
    %c0_15 = arith.constant 0 : index
    %c0_16 = arith.constant 0 : index
    %31 = vector.load %arg5[%c0_15, %c0_16] : memref<1x64xf32, #tpu.memory_space<vmem>>, vector<1x64xf32>
    %c0_17 = arith.constant 0 : index
    %c0_18 = arith.constant 0 : index
    %32 = vector.load %arg6[%c0_17, %c0_18] : memref<1x64xf32, #tpu.memory_space<vmem>>, vector<1x64xf32>
    %cst_19 = arith.constant dense<0.000000e+00> : vector<8x64xf32>
    %33 = tpu.matmul %29, %30, %cst_19 {dimension_numbers = #tpu.dot_dimension_numbers<[1], [0], [0], [1], [0, 0, 1, 1], [], []>} : vector<8x128xf32>, vector<128x64xf32>, vector<8x64xf32> -> vector<8x64xf32>
    %cst_20 = arith.constant dense<0.000000e+00> : vector<64xf32>
    %34 = vector.multi_reduction <add>, %33, %cst_20 [0] : vector<8x64xf32> to vector<64xf32>
    %35 = vector.shape_cast %34 : vector<64xf32> to vector<1x64xf32>
    %cst_21 = arith.constant 8.000000e+00 : f32
    %36 = vector.broadcast %cst_21 : f32 to vector<1x64xf32>
    %37 = arith.divf %35, %36 : vector<1x64xf32>
    %38 = vector.broadcast %37 : vector<1x64xf32> to vector<8x64xf32>
    %39 = arith.subf %33, %38 : vector<8x64xf32>
    %40 = vector.broadcast %37 : vector<1x64xf32> to vector<8x64xf32>
    %41 = arith.subf %33, %40 : vector<8x64xf32>
    %42 = arith.mulf %39, %41 : vector<8x64xf32>
    %cst_22 = arith.constant dense<0.000000e+00> : vector<64xf32>
    %43 = vector.multi_reduction <add>, %42, %cst_22 [0] : vector<8x64xf32> to vector<64xf32>
    %44 = vector.shape_cast %43 : vector<64xf32> to vector<1x64xf32>
    %cst_23 = arith.constant 8.000000e+00 : f32
    %45 = vector.broadcast %cst_23 : f32 to vector<1x64xf32>
    %46 = arith.divf %44, %45 : vector<1x64xf32>
    %cst_24 = arith.constant 9.99999974E-6 : f32
    %47 = vector.broadcast %cst_24 : f32 to vector<1x64xf32>
    %48 = arith.addf %46, %47 : vector<1x64xf32>
    %49 = math.rsqrt %48 : vector<1x64xf32>
    %50 = arith.mulf %31, %49 : vector<1x64xf32>
    %51 = arith.mulf %37, %50 : vector<1x64xf32>
    %52 = arith.subf %32, %51 : vector<1x64xf32>
    %53 = vector.broadcast %50 : vector<1x64xf32> to vector<8x64xf32>
    %54 = arith.mulf %33, %53 : vector<8x64xf32>
    %55 = vector.broadcast %52 : vector<1x64xf32> to vector<8x64xf32>
    %56 = arith.addf %54, %55 : vector<8x64xf32>
    %cst_25 = arith.constant 0.000000e+00 : f32
    %57 = vector.broadcast %cst_25 : f32 to vector<8x64xf32>
    %58 = arith.maximumf %56, %57 : vector<8x64xf32>
    %c0_26 = arith.constant 0 : index
    %c0_27 = arith.constant 0 : index
    %59 = vector.load %arg7[%c0_26, %c0_27] : memref<64x32xf32, #tpu.memory_space<vmem>>, vector<64x32xf32>
    %c0_28 = arith.constant 0 : index
    %c0_29 = arith.constant 0 : index
    %60 = vector.load %arg8[%c0_28, %c0_29] : memref<1x32xf32, #tpu.memory_space<vmem>>, vector<1x32xf32>
    %c0_30 = arith.constant 0 : index
    %c0_31 = arith.constant 0 : index
    %61 = vector.load %arg9[%c0_30, %c0_31] : memref<1x32xf32, #tpu.memory_space<vmem>>, vector<1x32xf32>
    %cst_32 = arith.constant dense<0.000000e+00> : vector<8x32xf32>
    %62 = tpu.matmul %58, %59, %cst_32 {dimension_numbers = #tpu.dot_dimension_numbers<[1], [0], [0], [1], [0, 0, 1, 1], [], []>} : vector<8x64xf32>, vector<64x32xf32>, vector<8x32xf32> -> vector<8x32xf32>
    %cst_33 = arith.constant dense<0.000000e+00> : vector<32xf32>
    %63 = vector.multi_reduction <add>, %62, %cst_33 [0] : vector<8x32xf32> to vector<32xf32>
    %64 = vector.shape_cast %63 : vector<32xf32> to vector<1x32xf32>
    %cst_34 = arith.constant 8.000000e+00 : f32
    %65 = vector.broadcast %cst_34 : f32 to vector<1x32xf32>
    %66 = arith.divf %64, %65 : vector<1x32xf32>
    %67 = vector.broadcast %66 : vector<1x32xf32> to vector<8x32xf32>
    %68 = arith.subf %62, %67 : vector<8x32xf32>
    %69 = vector.broadcast %66 : vector<1x32xf32> to vector<8x32xf32>
    %70 = arith.subf %62, %69 : vector<8x32xf32>
    %71 = arith.mulf %68, %70 : vector<8x32xf32>
    %cst_35 = arith.constant dense<0.000000e+00> : vector<32xf32>
    %72 = vector.multi_reduction <add>, %71, %cst_35 [0] : vector<8x32xf32> to vector<32xf32>
    %73 = vector.shape_cast %72 : vector<32xf32> to vector<1x32xf32>
    %cst_36 = arith.constant 8.000000e+00 : f32
    %74 = vector.broadcast %cst_36 : f32 to vector<1x32xf32>
    %75 = arith.divf %73, %74 : vector<1x32xf32>
    %cst_37 = arith.constant 9.99999974E-6 : f32
    %76 = vector.broadcast %cst_37 : f32 to vector<1x32xf32>
    %77 = arith.addf %75, %76 : vector<1x32xf32>
    %78 = math.rsqrt %77 : vector<1x32xf32>
    %79 = arith.mulf %60, %78 : vector<1x32xf32>
    %80 = arith.mulf %66, %79 : vector<1x32xf32>
    %81 = arith.subf %61, %80 : vector<1x32xf32>
    %82 = vector.broadcast %79 : vector<1x32xf32> to vector<8x32xf32>
    %83 = arith.mulf %62, %82 : vector<8x32xf32>
    %84 = vector.broadcast %81 : vector<1x32xf32> to vector<8x32xf32>
    %85 = arith.addf %83, %84 : vector<8x32xf32>
    %cst_38 = arith.constant 0.000000e+00 : f32
    %86 = vector.broadcast %cst_38 : f32 to vector<8x32xf32>
    %87 = arith.maximumf %85, %86 : vector<8x32xf32>
    %c0_39 = arith.constant 0 : index
    %c0_40 = arith.constant 0 : index
    %88 = vector.load %arg10[%c0_39, %c0_40] : memref<32x16xf32, #tpu.memory_space<vmem>>, vector<32x16xf32>
    %c0_41 = arith.constant 0 : index
    %c0_42 = arith.constant 0 : index
    %89 = vector.load %arg11[%c0_41, %c0_42] : memref<1x16xf32, #tpu.memory_space<vmem>>, vector<1x16xf32>
    %cst_43 = arith.constant dense<0.000000e+00> : vector<8x16xf32>
    %90 = tpu.matmul %87, %88, %cst_43 {dimension_numbers = #tpu.dot_dimension_numbers<[1], [0], [0], [1], [0, 0, 1, 1], [], []>} : vector<8x32xf32>, vector<32x16xf32>, vector<8x16xf32> -> vector<8x16xf32>
    %91 = vector.broadcast %89 : vector<1x16xf32> to vector<8x16xf32>
    %92 = arith.addf %90, %91 : vector<8x16xf32>
    %c0_44 = arith.constant 0 : index
    %c0_45 = arith.constant 0 : index
    %93 = vector.load %arg23[%c0_44, %c0_45] : memref<8x16xf32, #tpu.memory_space<vmem>>, vector<8x16xf32>
    tpu.vector_store %arg23[%c0_44, %c0_45], %92 {strides = array<i32>} : memref<8x16xf32, #tpu.memory_space<vmem>>, vector<8x16xf32>,
    %c0_46 = arith.constant 0 : index
    %c0_47 = arith.constant 0 : index
    %94 = vector.load %arg12[%c0_46, %c0_47] : memref<16x32xf32, #tpu.memory_space<vmem>>, vector<16x32xf32>
    %c0_48 = arith.constant 0 : index
    %c0_49 = arith.constant 0 : index
    %95 = vector.load %arg13[%c0_48, %c0_49] : memref<1x32xf32, #tpu.memory_space<vmem>>, vector<1x32xf32>
    %c0_50 = arith.constant 0 : index
    %c0_51 = arith.constant 0 : index
    %96 = vector.load %arg14[%c0_50, %c0_51] : memref<1x32xf32, #tpu.memory_space<vmem>>, vector<1x32xf32>
    %cst_52 = arith.constant dense<0.000000e+00> : vector<8x32xf32>
    %97 = tpu.matmul %92, %94, %cst_52 {dimension_numbers = #tpu.dot_dimension_numbers<[1], [0], [0], [1], [0, 0, 1, 1], [], []>} : vector<8x16xf32>, vector<16x32xf32>, vector<8x32xf32> -> vector<8x32xf32>
    %cst_53 = arith.constant dense<0.000000e+00> : vector<32xf32>
    %98 = vector.multi_reduction <add>, %97, %cst_53 [0] : vector<8x32xf32> to vector<32xf32>
    %99 = vector.shape_cast %98 : vector<32xf32> to vector<1x32xf32>
    %cst_54 = arith.constant 8.000000e+00 : f32
    %100 = vector.broadcast %cst_54 : f32 to vector<1x32xf32>
    %101 = arith.divf %99, %100 : vector<1x32xf32>
    %102 = vector.broadcast %101 : vector<1x32xf32> to vector<8x32xf32>
    %103 = arith.subf %97, %102 : vector<8x32xf32>
    %104 = vector.broadcast %101 : vector<1x32xf32> to vector<8x32xf32>
    %105 = arith.subf %97, %104 : vector<8x32xf32>
    %106 = arith.mulf %103, %105 : vector<8x32xf32>
    %cst_55 = arith.constant dense<0.000000e+00> : vector<32xf32>
    %107 = vector.multi_reduction <add>, %106, %cst_55 [0] : vector<8x32xf32> to vector<32xf32>
    %108 = vector.shape_cast %107 : vector<32xf32> to vector<1x32xf32>
    %cst_56 = arith.constant 8.000000e+00 : f32
    %109 = vector.broadcast %cst_56 : f32 to vector<1x32xf32>
    %110 = arith.divf %108, %109 : vector<1x32xf32>
    %cst_57 = arith.constant 9.99999974E-6 : f32
    %111 = vector.broadcast %cst_57 : f32 to vector<1x32xf32>
    %112 = arith.addf %110, %111 : vector<1x32xf32>
    %113 = math.rsqrt %112 : vector<1x32xf32>
    %114 = arith.mulf %95, %113 : vector<1x32xf32>
    %115 = arith.mulf %101, %114 : vector<1x32xf32>
    %116 = arith.subf %96, %115 : vector<1x32xf32>
    %117 = vector.broadcast %114 : vector<1x32xf32> to vector<8x32xf32>
    %118 = arith.mulf %97, %117 : vector<8x32xf32>
    %119 = vector.broadcast %116 : vector<1x32xf32> to vector<8x32xf32>
    %120 = arith.addf %118, %119 : vector<8x32xf32>
    %cst_58 = arith.constant 0.000000e+00 : f32
    %121 = vector.broadcast %cst_58 : f32 to vector<8x32xf32>
    %122 = arith.maximumf %120, %121 : vector<8x32xf32>
    %c0_59 = arith.constant 0 : index
    %c0_60 = arith.constant 0 : index
    %123 = vector.load %arg15[%c0_59, %c0_60] : memref<32x64xf32, #tpu.memory_space<vmem>>, vector<32x64xf32>
    %c0_61 = arith.constant 0 : index
    %c0_62 = arith.constant 0 : index
    %124 = vector.load %arg16[%c0_61, %c0_62] : memref<1x64xf32, #tpu.memory_space<vmem>>, vector<1x64xf32>
    %c0_63 = arith.constant 0 : index
    %c0_64 = arith.constant 0 : index
    %125 = vector.load %arg17[%c0_63, %c0_64] : memref<1x64xf32, #tpu.memory_space<vmem>>, vector<1x64xf32>
    %cst_65 = arith.constant dense<0.000000e+00> : vector<8x64xf32>
    %126 = tpu.matmul %122, %123, %cst_65 {dimension_numbers = #tpu.dot_dimension_numbers<[1], [0], [0], [1], [0, 0, 1, 1], [], []>} : vector<8x32xf32>, vector<32x64xf32>, vector<8x64xf32> -> vector<8x64xf32>
    %cst_66 = arith.constant dense<0.000000e+00> : vector<64xf32>
    %127 = vector.multi_reduction <add>, %126, %cst_66 [0] : vector<8x64xf32> to vector<64xf32>
    %128 = vector.shape_cast %127 : vector<64xf32> to vector<1x64xf32>
    %cst_67 = arith.constant 8.000000e+00 : f32
    %129 = vector.broadcast %cst_67 : f32 to vector<1x64xf32>
    %130 = arith.divf %128, %129 : vector<1x64xf32>
    %131 = vector.broadcast %130 : vector<1x64xf32> to vector<8x64xf32>
    %132 = arith.subf %126, %131 : vector<8x64xf32>
    %133 = vector.broadcast %130 : vector<1x64xf32> to vector<8x64xf32>
    %134 = arith.subf %126, %133 : vector<8x64xf32>
    %135 = arith.mulf %132, %134 : vector<8x64xf32>
    %cst_68 = arith.constant dense<0.000000e+00> : vector<64xf32>
    %136 = vector.multi_reduction <add>, %135, %cst_68 [0] : vector<8x64xf32> to vector<64xf32>
    %137 = vector.shape_cast %136 : vector<64xf32> to vector<1x64xf32>
    %cst_69 = arith.constant 8.000000e+00 : f32
    %138 = vector.broadcast %cst_69 : f32 to vector<1x64xf32>
    %139 = arith.divf %137, %138 : vector<1x64xf32>
    %cst_70 = arith.constant 9.99999974E-6 : f32
    %140 = vector.broadcast %cst_70 : f32 to vector<1x64xf32>
    %141 = arith.addf %139, %140 : vector<1x64xf32>
    %142 = math.rsqrt %141 : vector<1x64xf32>
    %143 = arith.mulf %124, %142 : vector<1x64xf32>
    %144 = arith.mulf %130, %143 : vector<1x64xf32>
    %145 = arith.subf %125, %144 : vector<1x64xf32>
    %146 = vector.broadcast %143 : vector<1x64xf32> to vector<8x64xf32>
    %147 = arith.mulf %126, %146 : vector<8x64xf32>
    %148 = vector.broadcast %145 : vector<1x64xf32> to vector<8x64xf32>
    %149 = arith.addf %147, %148 : vector<8x64xf32>
    %cst_71 = arith.constant 0.000000e+00 : f32
    %150 = vector.broadcast %cst_71 : f32 to vector<8x64xf32>
    %151 = arith.maximumf %149, %150 : vector<8x64xf32>
    %c0_72 = arith.constant 0 : index
    %c0_73 = arith.constant 0 : index
    %152 = vector.load %arg18[%c0_72, %c0_73] : memref<64x128xf32, #tpu.memory_space<vmem>>, vector<64x128xf32>
    %c0_74 = arith.constant 0 : index
    %c0_75 = arith.constant 0 : index
    %153 = vector.load %arg19[%c0_74, %c0_75] : memref<1x128xf32, #tpu.memory_space<vmem>>, vector<1x128xf32>
    %c0_76 = arith.constant 0 : index
    %c0_77 = arith.constant 0 : index
    %154 = vector.load %arg20[%c0_76, %c0_77] : memref<1x128xf32, #tpu.memory_space<vmem>>, vector<1x128xf32>
    %cst_78 = arith.constant dense<0.000000e+00> : vector<8x128xf32>
    %155 = tpu.matmul %151, %152, %cst_78 {dimension_numbers = #tpu.dot_dimension_numbers<[1], [0], [0], [1], [0, 0, 1, 1], [], []>} : vector<8x64xf32>, vector<64x128xf32>, vector<8x128xf32> -> vector<8x128xf32>
    %cst_79 = arith.constant dense<0.000000e+00> : vector<128xf32>
    %156 = vector.multi_reduction <add>, %155, %cst_79 [0] : vector<8x128xf32> to vector<128xf32>
    %157 = vector.shape_cast %156 : vector<128xf32> to vector<1x128xf32>
    %cst_80 = arith.constant 8.000000e+00 : f32
    %158 = vector.broadcast %cst_80 : f32 to vector<1x128xf32>
    %159 = arith.divf %157, %158 : vector<1x128xf32>
    %160 = vector.broadcast %159 : vector<1x128xf32> to vector<8x128xf32>
    %161 = arith.subf %155, %160 : vector<8x128xf32>
    %162 = vector.broadcast %159 : vector<1x128xf32> to vector<8x128xf32>
    %163 = arith.subf %155, %162 : vector<8x128xf32>
    %164 = arith.mulf %161, %163 : vector<8x128xf32>
    %cst_81 = arith.constant dense<0.000000e+00> : vector<128xf32>
    %165 = vector.multi_reduction <add>, %164, %cst_81 [0] : vector<8x128xf32> to vector<128xf32>
    %166 = vector.shape_cast %165 : vector<128xf32> to vector<1x128xf32>
    %cst_82 = arith.constant 8.000000e+00 : f32
    %167 = vector.broadcast %cst_82 : f32 to vector<1x128xf32>
    %168 = arith.divf %166, %167 : vector<1x128xf32>
    %cst_83 = arith.constant 9.99999974E-6 : f32
    %169 = vector.broadcast %cst_83 : f32 to vector<1x128xf32>
    %170 = arith.addf %168, %169 : vector<1x128xf32>
    %171 = math.rsqrt %170 : vector<1x128xf32>
    %172 = arith.mulf %153, %171 : vector<1x128xf32>
    %173 = arith.mulf %159, %172 : vector<1x128xf32>
    %174 = arith.subf %154, %173 : vector<1x128xf32>
    %175 = vector.broadcast %172 : vector<1x128xf32> to vector<8x128xf32>
    %176 = arith.mulf %155, %175 : vector<8x128xf32>
    %177 = vector.broadcast %174 : vector<1x128xf32> to vector<8x128xf32>
    %178 = arith.addf %176, %177 : vector<8x128xf32>
    %cst_84 = arith.constant 0.000000e+00 : f32
    %179 = vector.broadcast %cst_84 : f32 to vector<8x128xf32>
    %180 = arith.maximumf %178, %179 : vector<8x128xf32>
    %c0_85 = arith.constant 0 : index
    %c0_86 = arith.constant 0 : index
    %181 = vector.load %arg21[%c0_85, %c0_86] : memref<128x32xf32, #tpu.memory_space<vmem>>, vector<128x32xf32>
    %c0_87 = arith.constant 0 : index
    %c0_88 = arith.constant 0 : index
    %182 = vector.load %arg22[%c0_87, %c0_88] : memref<1x32xf32, #tpu.memory_space<vmem>>, vector<1x32xf32>
    %cst_89 = arith.constant dense<0.000000e+00> : vector<8x32xf32>
    %183 = tpu.matmul %180, %181, %cst_89 {dimension_numbers = #tpu.dot_dimension_numbers<[1], [0], [0], [1], [0, 0, 1, 1], [], []>} : vector<8x128xf32>, vector<128x32xf32>, vector<8x32xf32> -> vector<8x32xf32>
    %184 = vector.broadcast %182 : vector<1x32xf32> to vector<8x32xf32>
    %185 = arith.addf %183, %184 : vector<8x32xf32>
    %cst_90 = arith.constant 0.000000e+00 : f32
    %186 = vector.broadcast %cst_90 : f32 to vector<8x32xf32>
    %187 = arith.subf %186, %185 : vector<8x32xf32>
    %188 = math.exp %187 : vector<8x32xf32>
    %cst_91 = arith.constant 1.000000e+00 : f32
    %189 = vector.broadcast %cst_91 : f32 to vector<8x32xf32>
    %190 = arith.addf %189, %188 : vector<8x32xf32>
    %cst_92 = arith.constant 1.000000e+00 : f32
    %191 = vector.broadcast %cst_92 : f32 to vector<8x32xf32>
    %192 = arith.divf %191, %190 : vector<8x32xf32>
    %c0_93 = arith.constant 0 : index
    %c0_94 = arith.constant 0 : index
    %193 = vector.load %arg24[%c0_93, %c0_94] : memref<8x32xf32, #tpu.memory_space<vmem>>, vector<8x32xf32>
    tpu.vector_store %arg24[%c0_93, %c0_94], %192 {strides = array<i32>} : memref<8x32xf32, #tpu.memory_space<vmem>>, vector<8x32xf32>,
    return
  }
}

</mosaic_0001>

<llo_original>
// kernel: tpu_custom_call.1
$region0: #{tpu_custom_call.1}
  #allocation0 [shape = 'u32[]', space=smem, size = 0x4, offset = 0x4, fixed_abs, tag = 'smem constant byte address 0x4 - core index']
  #allocation1 [shape = 'u32[144,128]{1,0:T(1,128)}', space=vmem, size = 0x12000, scoped, tag = 'internal scratch']
  %s0 = inlined_call_operand.vmem [shape: f32[8,32], index: 0, kind: input, shape index: {}]
  %s1 = inlined_call_operand.vmem [shape: f32[32,128], index: 1, kind: input, shape index: {}]
  %s2 = inlined_call_operand.vmem [shape: f32[1,128], index: 2, kind: input, shape index: {}]
  %s3 = inlined_call_operand.vmem [shape: f32[1,128], index: 3, kind: input, shape index: {}]
  %s4 = inlined_call_operand.vmem [shape: f32[128,64], index: 4, kind: input, shape index: {}]
  %s5 = inlined_call_operand.vmem [shape: f32[1,64], index: 5, kind: input, shape index: {}]
  %s6 = inlined_call_operand.vmem [shape: f32[1,64], index: 6, kind: input, shape index: {}]
  %s7 = inlined_call_operand.vmem [shape: f32[64,32], index: 7, kind: input, shape index: {}]
  %s8 = inlined_call_operand.vmem [shape: f32[1,32], index: 8, kind: input, shape index: {}]
  %s9 = inlined_call_operand.vmem [shape: f32[1,32], index: 9, kind: input, shape index: {}]
  %s10 = inlined_call_operand.vmem [shape: f32[32,16], index: 10, kind: input, shape index: {}]
  %s11 = inlined_call_operand.vmem [shape: f32[1,16], index: 11, kind: input, shape index: {}]
  %s12 = inlined_call_operand.vmem [shape: f32[16,32], index: 12, kind: input, shape index: {}]
  %s13 = inlined_call_operand.vmem [shape: f32[1,32], index: 13, kind: input, shape index: {}]
  %s14 = inlined_call_operand.vmem [shape: f32[1,32], index: 14, kind: input, shape index: {}]
  %s15 = inlined_call_operand.vmem [shape: f32[32,64], index: 15, kind: input, shape index: {}]
  %s16 = inlined_call_operand.vmem [shape: f32[1,64], index: 16, kind: input, shape index: {}]
  %s17 = inlined_call_operand.vmem [shape: f32[1,64], index: 17, kind: input, shape index: {}]
  %s18 = inlined_call_operand.vmem [shape: f32[64,128], index: 18, kind: input, shape index: {}]
  %s19 = inlined_call_operand.vmem [shape: f32[1,128], index: 19, kind: input, shape index: {}]
  %s20 = inlined_call_operand.vmem [shape: f32[1,128], index: 20, kind: input, shape index: {}]
  %s21 = inlined_call_operand.vmem [shape: f32[128,32], index: 21, kind: input, shape index: {}]
  %s22 = inlined_call_operand.vmem [shape: f32[1,32], index: 22, kind: input, shape index: {}]
  %s23 = inlined_call_operand.hbm [shape: f32[8,16], index: 23, kind: output, shape index: {0}]
  %s24 = inlined_call_operand.hbm [shape: f32[8,32], index: 24, kind: output, shape index: {1}]
  %25 = xla_tuple %s23, %s24
  %s26 = sld [smem:[#allocation0]]
  $region110: #{tpu_custom_call.1} parent=0
    _
  %s28 = ssub.s32 1, %s26
  %s29 = scalar_select 0, %s28, %s26
  $region1: #{tpu_custom_call.1} parent=0
    #allocation2 [shape = 'u8[4096]{0}', space=vmem, size = 0x1000, scoped, tag = 'output window, operand 0, single buffered']
    #allocation3 [shape = 's32[1]{0}', space=sflag, size = 0x4, scoped, tag = 'scoped memory for tpu_custom_call.1']
    #allocation4 [shape = 'u8[4096]{0}', space=vmem, size = 0x1000, scoped, tag = 'output window, operand 1, single buffered']
    #allocation5 [shape = 's32[1]{0}', space=sflag, size = 0x4, scoped, tag = 'scoped memory for tpu_custom_call.1']
    %30 = vsyncpa [#allocation3], 0
    %31 = vsyncpa [#allocation5], 0
    // Predicated region
    $region2: #{tpu_custom_call.1} parent=1 // pred_check
      _
    $region3: #{tpu_custom_call.1} parent=1 // pred_check_branch
      %33 = sbr.rel (0) target = $region5
    $region4: #{tpu_custom_call.1} parent=1 // pred_region
      _
    $region5: #{tpu_custom_call.1} parent=1 // pred_fallthru
      _
    // Predicated region
    $region6: #{tpu_custom_call.1} parent=1 // pred_check
      _
    $region7: #{tpu_custom_call.1} parent=1 // pred_check_branch
      %35 = sbr.rel (0) target = $region9
    $region8: #{tpu_custom_call.1} parent=1 // pred_region
      _
    $region9: #{tpu_custom_call.1} parent=1 // pred_fallthru
      _
    // Predicated region
    $region10: #{tpu_custom_call.1} parent=1 // pred_check
      _
    $region11: #{tpu_custom_call.1} parent=1 // pred_check_branch
      %37 = sbr.rel (0) target = $region13
    $region12: #{tpu_custom_call.1} parent=1 // pred_region
      _
    $region13: #{tpu_custom_call.1} parent=1 // pred_fallthru
      _
    // Predicated region
    $region14: #{tpu_custom_call.1} parent=1 // pred_check
      _
    $region15: #{tpu_custom_call.1} parent=1 // pred_check_branch
      %39 = sbr.rel (0) target = $region17
    $region16: #{tpu_custom_call.1} parent=1 // pred_region
      _
    $region17: #{tpu_custom_call.1} parent=1 // pred_fallthru
      _
    // Predicated region
    $region18: #{tpu_custom_call.1} parent=1 // pred_check
      _
    $region19: #{tpu_custom_call.1} parent=1 // pred_check_branch
      %41 = sbr.rel (0) target = $region21
    $region20: #{tpu_custom_call.1} parent=1 // pred_region
      _
    $region21: #{tpu_custom_call.1} parent=1 // pred_fallthru
      _
    // Predicated region
    $region22: #{tpu_custom_call.1} parent=1 // pred_check
      _
    $region23: #{tpu_custom_call.1} parent=1 // pred_check_branch
      %43 = sbr.rel (0) target = $region25
    $region24: #{tpu_custom_call.1} parent=1 // pred_region
      _
    $region25: #{tpu_custom_call.1} parent=1 // pred_fallthru
      _
    // Predicated region
    $region26: #{tpu_custom_call.1} parent=1 // pred_check
      _
    $region27: #{tpu_custom_call.1} parent=1 // pred_check_branch
      %45 = sbr.rel (0) target = $region29
    $region28: #{tpu_custom_call.1} parent=1 // pred_region
      _
    $region29: #{tpu_custom_call.1} parent=1 // pred_fallthru
      _
    // Predicated region
    $region30: #{tpu_custom_call.1} parent=1 // pred_check
      _
    $region31: #{tpu_custom_call.1} parent=1 // pred_check_branch
      %47 = sbr.rel (0) target = $region33
    $region32: #{tpu_custom_call.1} parent=1 // pred_region
      _
    $region33: #{tpu_custom_call.1} parent=1 // pred_fallthru
      _
    // Predicated region
    $region34: #{tpu_custom_call.1} parent=1 // pred_check
      _
    $region35: #{tpu_custom_call.1} parent=1 // pred_check_branch
      %49 = sbr.rel (0) target = $region37
    $region36: #{tpu_custom_call.1} parent=1 // pred_region
      _
    $region37: #{tpu_custom_call.1} parent=1 // pred_fallthru
      _
    // Predicated region
    $region38: #{tpu_custom_call.1} parent=1 // pred_check
      _
    $region39: #{tpu_custom_call.1} parent=1 // pred_check_branch
      %51 = sbr.rel (0) target = $region41
    $region40: #{tpu_custom_call.1} parent=1 // pred_region
      _
    $region41: #{tpu_custom_call.1} parent=1 // pred_fallthru
      _
    // Predicated region
    $region42: #{tpu_custom_call.1} parent=1 // pred_check
      _
    $region43: #{tpu_custom_call.1} parent=1 // pred_check_branch
      %53 = sbr.rel (0) target = $region45
    $region44: #{tpu_custom_call.1} parent=1 // pred_region
      _
    $region45: #{tpu_custom_call.1} parent=1 // pred_fallthru
      _
    // Predicated region
    $region46: #{tpu_custom_call.1} parent=1 // pred_check
      _
    $region47: #{tpu_custom_call.1} parent=1 // pred_check_branch
      %55 = sbr.rel (0) target = $region49
    $region48: #{tpu_custom_call.1} parent=1 // pred_region
      _
    $region49: #{tpu_custom_call.1} parent=1 // pred_fallthru
      _
    // Predicated region
    $region50: #{tpu_custom_call.1} parent=1 // pred_check
      _
    $region51: #{tpu_custom_call.1} parent=1 // pred_check_branch
      %57 = sbr.rel (0) target = $region53
    $region52: #{tpu_custom_call.1} parent=1 // pred_region
      _
    $region53: #{tpu_custom_call.1} parent=1 // pred_fallthru
      _
    // Predicated region
    $region54: #{tpu_custom_call.1} parent=1 // pred_check
      _
    $region55: #{tpu_custom_call.1} parent=1 // pred_check_branch
      %59 = sbr.rel (0) target = $region57
    $region56: #{tpu_custom_call.1} parent=1 // pred_region
      _
    $region57: #{tpu_custom_call.1} parent=1 // pred_fallthru
      _
    // Predicated region
    $region58: #{tpu_custom_call.1} parent=1 // pred_check
      _
    $region59: #{tpu_custom_call.1} parent=1 // pred_check_branch
      %61 = sbr.rel (0) target = $region61
    $region60: #{tpu_custom_call.1} parent=1 // pred_region
      _
    $region61: #{tpu_custom_call.1} parent=1 // pred_fallthru
      _
    // Predicated region
    $region62: #{tpu_custom_call.1} parent=1 // pred_check
      _
    $region63: #{tpu_custom_call.1} parent=1 // pred_check_branch
      %63 = sbr.rel (0) target = $region65
    $region64: #{tpu_custom_call.1} parent=1 // pred_region
      _
    $region65: #{tpu_custom_call.1} parent=1 // pred_fallthru
      _
    // Predicated region
    $region66: #{tpu_custom_call.1} parent=1 // pred_check
      _
    $region67: #{tpu_custom_call.1} parent=1 // pred_check_branch
      %65 = sbr.rel (0) target = $region69
    $region68: #{tpu_custom_call.1} parent=1 // pred_region
      _
    $region69: #{tpu_custom_call.1} parent=1 // pred_fallthru
      _
    // Predicated region
    $region70: #{tpu_custom_call.1} parent=1 // pred_check
      _
    $region71: #{tpu_custom_call.1} parent=1 // pred_check_branch
      %67 = sbr.rel (0) target = $region73
    $region72: #{tpu_custom_call.1} parent=1 // pred_region
      _
    $region73: #{tpu_custom_call.1} parent=1 // pred_fallthru
      _
    // Predicated region
    $region74: #{tpu_custom_call.1} parent=1 // pred_check
      _
    $region75: #{tpu_custom_call.1} parent=1 // pred_check_branch
      %69 = sbr.rel (0) target = $region77
    $region76: #{tpu_custom_call.1} parent=1 // pred_region
      _
    $region77: #{tpu_custom_call.1} parent=1 // pred_fallthru
      _
    // Predicated region
    $region78: #{tpu_custom_call.1} parent=1 // pred_check
      _
    $region79: #{tpu_custom_call.1} parent=1 // pred_check_branch
      %71 = sbr.rel (0) target = $region81
    $region80: #{tpu_custom_call.1} parent=1 // pred_region
      _
    $region81: #{tpu_custom_call.1} parent=1 // pred_fallthru
      _
    // Predicated region
    $region82: #{tpu_custom_call.1} parent=1 // pred_check
      _
    $region83: #{tpu_custom_call.1} parent=1 // pred_check_branch
      %73 = sbr.rel (0) target = $region85
    $region84: #{tpu_custom_call.1} parent=1 // pred_region
      _
    $region85: #{tpu_custom_call.1} parent=1 // pred_fallthru
      _
    // Predicated region
    $region86: #{tpu_custom_call.1} parent=1 // pred_check
      _
    $region87: #{tpu_custom_call.1} parent=1 // pred_check_branch
      %75 = sbr.rel (0) target = $region89
    $region88: #{tpu_custom_call.1} parent=1 // pred_region
      _
    $region89: #{tpu_custom_call.1} parent=1 // pred_fallthru
      _
    // Predicated region
    $region90: #{tpu_custom_call.1} parent=1 // pred_check
      _
    $region91: #{tpu_custom_call.1} parent=1 // pred_check_branch
      %77 = sbr.rel (0) target = $region93
    $region92: #{tpu_custom_call.1} parent=1 // pred_region
      _
    $region93: #{tpu_custom_call.1} parent=1 // pred_fallthru
      _
    %v78 = vld [vmem:[%s0] sm:$0xff]
    %v79 = vld [vmem:[%s1] sm:$0xff]
    %v80 = vld [vmem:[%s1 + $0x8] sm:$0xff]
    %v81 = vld [vmem:[%s1 + $0x10] sm:$0xff]
    %v82 = vld [vmem:[%s1 + $0x18] sm:$0xff]
    %v83 = vld [vmem:[%s2] sm:$0x1]
    %v84 = vld [vmem:[%s3] sm:$0x1]
    %vm85 = vcmask 261120
    %v87 = vsel %vm85, %v78, 0
    %89 = vmatprep.subr.mxu0 0.0
    %90 = vmatpush1.msra.mxu0 %v79
    %91 = vmatprep.subr.mxu0 0.0
    %92 = vmatpush1.msra.mxu0 %v80
    %93 = vmatprep.subr.mxu0 0.0
    %94 = vmatpush1.msra.mxu0 %v81
    %95 = vmatprep.subr.mxu0 0.0
    %96 = vmatpush1.msra.mxu0 %v82
    %97 = vmatprep.subr.mxu0 0.0
    %98 = vmatpush1.msra.mxu0 0.0
    %99 = vmatprep.subr.mxu0 0.0
    %100 = vmatpush1.msra.mxu0 0.0
    %101 = vmatprep.subr.mxu0 0.0
    %102 = vmatpush1.msra.mxu0 0.0
    %103 = vmatprep.subr.mxu0 0.0
    %104 = vmatpush1.msra.mxu0 0.0
    %105 = vmatprep.subr.mxu0 0.0
    %106 = vmatpush1.msra.mxu0 0.0
    %107 = vmatprep.subr.mxu0 0.0
    %108 = vmatpush1.msra.mxu0 0.0
    %109 = vmatprep.subr.mxu0 0.0
    %110 = vmatpush1.msra.mxu0 0.0
    %111 = vmatprep.subr.mxu0 0.0
    %112 = vmatpush1.msra.mxu0 0.0
    %113 = vmatprep.subr.mxu0 0.0
    %114 = vmatpush1.msra.mxu0 0.0
    %115 = vmatprep.subr.mxu0 0.0
    %116 = vmatpush1.msra.mxu0 0.0
    %117 = vmatprep.subr.mxu0 0.0
    %118 = vmatpush1.msra.mxu0 0.0
    %119 = vmatprep.subr.mxu0 0.0
    %120 = vmatpush1.msra.mxu0 0.0
    %121 = vmatprep.subr.mxu0 0.0
    %122 = vmatpush1.msra.mxu0 0.0
    %123 = vmatprep.subr.mxu0 0.0
    %124 = vmatpush1.msra.mxu0 0.0
    %125 = vmatprep.subr.mxu0 0.0
    %126 = vmatpush1.msra.mxu0 0.0
    %127 = vmatprep.subr.mxu0 0.0
    %128 = vmatpush1.msra.mxu0 0.0
    %129 = vmatprep.subr.mxu0 0.0
    %130 = vmatpush1.msra.mxu0 0.0
    %131 = vmatprep.subr.mxu0 0.0
    %132 = vmatpush1.msra.mxu0 0.0
    %133 = vmatprep.subr.mxu0 0.0
    %134 = vmatpush1.msra.mxu0 0.0
    %135 = vmatprep.subr.mxu0 0.0
    %136 = vmatpush1.msra.mxu0 0.0
    %137 = vmatprep.subr.mxu0 0.0
    %138 = vmatpush1.msra.mxu0 0.0
    %139 = vmatprep.subr.mxu0 0.0
    %140 = vmatpush1.msra.mxu0 0.0
    %141 = vmatprep.subr.mxu0 0.0
    %142 = vmatpush1.msra.mxu0 0.0
    %143 = vmatprep.subr.mxu0 0.0
    %144 = vmatpush1.msra.mxu0 0.0
    %145 = vmatprep.subr.mxu0 0.0
    %146 = vmatpush1.msra.mxu0 0.0
    %147 = vmatprep.subr.mxu0 0.0
    %148 = vmatpush1.msra.mxu0 0.0
    %149 = vmatprep.subr.mxu0 0.0
    %150 = vmatpush1.msra.mxu0 0.0
    %151 = vmatprep.subr.mxu0 0.0
    %152 = vmatpush1.msra.mxu0 0.0
    %153 = vmatprep.mubr.f32.mxu0 0.0
    %154 = vmatmul.mubr.f32.gmra.mrb[0].mxu0 %v87
    %v155 = vpop.f32.mrb[0].mxu0
    %v156 = vadd.f32 0.0, %v155
    %v157 = vpop.f32.mrb[0].mxu0
    %158 = vdwg.mxu0
    %v159 = vrot.slane %v156, 4
    %v160 = vadd.f32 %v156, %v159
    %v161 = vrot.slane %v160, 2
    %v162 = vadd.f32 %v160, %v161
    %v163 = vrot.slane %v162, 1
    %v164 = vadd.f32 %v162, %v163
    %v165 = vrcp.pop 8.0
    %v166 = vmul.f32 %v164, %v165
    %v167 = vsub.f32 %v156, %v166
    %v168 = vmul.f32 %v167, %v167
    %v169 = vrot.slane %v168, 4
    %v170 = vadd.f32 %v168, %v169
    %v171 = vrot.slane %v170, 2
    %v172 = vadd.f32 %v170, %v171
    %v173 = vrot.slane %v172, 1
    %v174 = vadd.f32 %v172, %v173
    %v175 = vmul.f32 %v174, %v165
    %v176 = vadd.f32 %v175, 1e-05
    %v177 = vrsqrt.pop %v176
    %v178 = vmul.f32 %v83, %v177
    %v179 = vmul.f32 %v166, %v178
    %v180 = vsub.f32 %v84, %v179
    %v182 = vlaneseq
    %v183 = vshrl.u32 %v182, 7
    %v184 = vsub.s32 0, %v183
    %v185 = vrot.slane %v178, %v184
    %v187 = vmul.f32 %v156, %v185
    %v189 = vlaneseq
    %v190 = vshrl.u32 %v189, 7
    %v191 = vsub.s32 0, %v190
    %v192 = vrot.slane %v180, %v191
    %v194 = vadd.f32 %v187, %v192
    %v195 = vmax.f32 %v194, 0.0
    %v196 = vld [vmem:[%s4] sm:$0xff]
    %v197 = vld [vmem:[%s4 + $0x8] sm:$0xff]
    %v198 = vld [vmem:[%s4 + $0x10] sm:$0xff]
    %v199 = vld [vmem:[%s4 + $0x18] sm:$0xff]
    %v200 = vld [vmem:[%s4 + $0x20] sm:$0xff]
    %v201 = vld [vmem:[%s4 + $0x28] sm:$0xff]
    %v202 = vld [vmem:[%s4 + $0x30] sm:$0xff]
    %v203 = vld [vmem:[%s4 + $0x38] sm:$0xff]
    %v204 = vld [vmem:[%s4 + $0x40] sm:$0xff]
    %v205 = vld [vmem:[%s4 + $0x48] sm:$0xff]
    %v206 = vld [vmem:[%s4 + $0x50] sm:$0xff]
    %v207 = vld [vmem:[%s4 + $0x58] sm:$0xff]
    %v208 = vld [vmem:[%s4 + $0x60] sm:$0xff]
    %v209 = vld [vmem:[%s4 + $0x68] sm:$0xff]
    %v210 = vld [vmem:[%s4 + $0x70] sm:$0xff]
    %v211 = vld [vmem:[%s4 + $0x78] sm:$0xff]
    %v212 = vld [vmem:[%s5] sm:$0x1]
    %v213 = vld [vmem:[%s6] sm:$0x1]
    %214 = vmatprep.subr.mxu0 0.0
    %215 = vmatpush1.msra.mxu0 %v196
    %216 = vmatprep.subr.mxu0 0.0
    %217 = vmatpush1.msra.mxu0 %v197
    %218 = vmatprep.subr.mxu0 0.0
    %219 = vmatpush1.msra.mxu0 %v198
    %220 = vmatprep.subr.mxu0 0.0
    %221 = vmatpush1.msra.mxu0 %v199
    %222 = vmatprep.subr.mxu0 0.0
    %223 = vmatpush1.msra.mxu0 %v200
    %224 = vmatprep.subr.mxu0 0.0
    %225 = vmatpush1.msra.mxu0 %v201
    %226 = vmatprep.subr.mxu0 0.0
    %227 = vmatpush1.msra.mxu0 %v202
    %228 = vmatprep.subr.mxu0 0.0
    %229 = vmatpush1.msra.mxu0 %v203
    %230 = vmatprep.subr.mxu0 0.0
    %231 = vmatpush1.msra.mxu0 %v204
    %232 = vmatprep.subr.mxu0 0.0
    %233 = vmatpush1.msra.mxu0 %v205
    %234 = vmatprep.subr.mxu0 0.0
    %235 = vmatpush1.msra.mxu0 %v206
    %236 = vmatprep.subr.mxu0 0.0
    %237 = vmatpush1.msra.mxu0 %v207
    %238 = vmatprep.subr.mxu0 0.0
    %239 = vmatpush1.msra.mxu0 %v208
    %240 = vmatprep.subr.mxu0 0.0
    %241 = vmatpush1.msra.mxu0 %v209
    %242 = vmatprep.subr.mxu0 0.0
    %243 = vmatpush1.msra.mxu0 %v210
    %244 = vmatprep.subr.mxu0 0.0
    %245 = vmatpush1.msra.mxu0 %v211
    %246 = vmatprep.subr.mxu0 0.0
    %247 = vmatpush1.msra.mxu0 0.0
    %248 = vmatprep.subr.mxu0 0.0
    %249 = vmatpush1.msra.mxu0 0.0
    %250 = vmatprep.subr.mxu0 0.0
    %251 = vmatpush1.msra.mxu0 0.0
    %252 = vmatprep.subr.mxu0 0.0
    %253 = vmatpush1.msra.mxu0 0.0
    %254 = vmatprep.subr.mxu0 0.0
    %255 = vmatpush1.msra.mxu0 0.0
    %256 = vmatprep.subr.mxu0 0.0
    %257 = vmatpush1.msra.mxu0 0.0
    %258 = vmatprep.subr.mxu0 0.0
    %259 = vmatpush1.msra.mxu0 0.0
    %260 = vmatprep.subr.mxu0 0.0
    %261 = vmatpush1.msra.mxu0 0.0
    %262 = vmatprep.subr.mxu0 0.0
    %263 = vmatpush1.msra.mxu0 0.0
    %264 = vmatprep.subr.mxu0 0.0
    %265 = vmatpush1.msra.mxu0 0.0
    %266 = vmatprep.subr.mxu0 0.0
    %267 = vmatpush1.msra.mxu0 0.0
    %268 = vmatprep.subr.mxu0 0.0
    %269 = vmatpush1.msra.mxu0 0.0
    %270 = vmatprep.subr.mxu0 0.0
    %271 = vmatpush1.msra.mxu0 0.0
    %272 = vmatprep.subr.mxu0 0.0
    %273 = vmatpush1.msra.mxu0 0.0
    %274 = vmatprep.subr.mxu0 0.0
    %275 = vmatpush1.msra.mxu0 0.0
    %276 = vmatprep.subr.mxu0 0.0
    %277 = vmatpush1.msra.mxu0 0.0
    %278 = vmatprep.mubr.f32.mxu0 0.0
    %279 = vmatmul.mubr.f32.gmra.mrb[0].mxu0 %v195
    %v280 = vpop.f32.mrb[0].mxu0
    %v281 = vadd.f32 0.0, %v280
    %v282 = vpop.f32.mrb[0].mxu0
    %283 = vdwg.mxu0
    %vm284 = vcmask 523264
    %v285 = vsel %vm284, %v281, 0.0
    %v286 = vrot.slane %v285, 4
    %v287 = vadd.f32 %v285, %v286
    %v288 = vrot.slane %v287, 2
    %v289 = vadd.f32 %v287, %v288
    %v290 = vrot.slane %v289, 1
    %v291 = vadd.f32 %v289, %v290
    %v292 = vmul.f32 %v291, %v165
    %v293 = vsub.f32 %v281, %v292
    %v294 = vmul.f32 %v293, %v293
    %v295 = vsel %vm284, %v294, 0.0
    %v296 = vrot.slane %v295, 4
    %v297 = vadd.f32 %v295, %v296
    %v298 = vrot.slane %v297, 2
    %v299 = vadd.f32 %v297, %v298
    %v300 = vrot.slane %v299, 1
    %v301 = vadd.f32 %v299, %v300
    %v302 = vmul.f32 %v301, %v165
    %v303 = vadd.f32 %v302, 1e-05
    %v304 = vrsqrt.pop %v303
    %v305 = vmul.f32 %v212, %v304
    %v306 = vmul.f32 %v292, %v305
    %v307 = vsub.f32 %v213, %v306
    %v309 = vlaneseq
    %v310 = vshrl.u32 %v309, 7
    %v311 = vsub.s32 0, %v310
    %v312 = vrot.slane %v305, %v311
    %v314 = vmul.f32 %v281, %v312
    %v316 = vlaneseq
    %v317 = vshrl.u32 %v316, 7
    %v318 = vsub.s32 0, %v317
    %v319 = vrot.slane %v307, %v318
    %v321 = vadd.f32 %v314, %v319
    %v322 = vmax.f32 %v321, 0.0
    %v323 = vld [vmem:[%s7] sm:$0xff]
    %v324 = vld [vmem:[%s7 + $0x8] sm:$0xff]
    %v325 = vld [vmem:[%s7 + $0x10] sm:$0xff]
    %v326 = vld [vmem:[%s7 + $0x18] sm:$0xff]
    %v327 = vld [vmem:[%s7 + $0x20] sm:$0xff]
    %v328 = vld [vmem:[%s7 + $0x28] sm:$0xff]
    %v329 = vld [vmem:[%s7 + $0x30] sm:$0xff]
    %v330 = vld [vmem:[%s7 + $0x38] sm:$0xff]
    %v331 = vld [vmem:[%s8] sm:$0x1]
    %v332 = vld [vmem:[%s9] sm:$0x1]
    %v334 = vsel %vm284, %v322, 0
    %336 = vmatprep.subr.mxu0 0.0
    %337 = vmatpush1.msra.mxu0 %v323
    %338 = vmatprep.subr.mxu0 0.0
    %339 = vmatpush1.msra.mxu0 %v324
    %340 = vmatprep.subr.mxu0 0.0
    %341 = vmatpush1.msra.mxu0 %v325
    %342 = vmatprep.subr.mxu0 0.0
    %343 = vmatpush1.msra.mxu0 %v326
    %344 = vmatprep.subr.mxu0 0.0
    %345 = vmatpush1.msra.mxu0 %v327
    %346 = vmatprep.subr.mxu0 0.0
    %347 = vmatpush1.msra.mxu0 %v328
    %348 = vmatprep.subr.mxu0 0.0
    %349 = vmatpush1.msra.mxu0 %v329
    %350 = vmatprep.subr.mxu0 0.0
    %351 = vmatpush1.msra.mxu0 %v330
    %352 = vmatprep.subr.mxu0 0.0
    %353 = vmatpush1.msra.mxu0 0.0
    %354 = vmatprep.subr.mxu0 0.0
    %355 = vmatpush1.msra.mxu0 0.0
    %356 = vmatprep.subr.mxu0 0.0
    %357 = vmatpush1.msra.mxu0 0.0
    %358 = vmatprep.subr.mxu0 0.0
    %359 = vmatpush1.msra.mxu0 0.0
    %360 = vmatprep.subr.mxu0 0.0
    %361 = vmatpush1.msra.mxu0 0.0
    %362 = vmatprep.subr.mxu0 0.0
    %363 = vmatpush1.msra.mxu0 0.0
    %364 = vmatprep.subr.mxu0 0.0
    %365 = vmatpush1.msra.mxu0 0.0
    %366 = vmatprep.subr.mxu0 0.0
    %367 = vmatpush1.msra.mxu0 0.0
    %368 = vmatprep.subr.mxu0 0.0
    %369 = vmatpush1.msra.mxu0 0.0
    %370 = vmatprep.subr.mxu0 0.0
    %371 = vmatpush1.msra.mxu0 0.0
    %372 = vmatprep.subr.mxu0 0.0
    %373 = vmatpush1.msra.mxu0 0.0
    %374 = vmatprep.subr.mxu0 0.0
    %375 = vmatpush1.msra.mxu0 0.0
    %376 = vmatprep.subr.mxu0 0.0
    %377 = vmatpush1.msra.mxu0 0.0
    %378 = vmatprep.subr.mxu0 0.0
    %379 = vmatpush1.msra.mxu0 0.0
    %380 = vmatprep.subr.mxu0 0.0
    %381 = vmatpush1.msra.mxu0 0.0
    %382 = vmatprep.subr.mxu0 0.0
    %383 = vmatpush1.msra.mxu0 0.0
    %384 = vmatprep.subr.mxu0 0.0
    %385 = vmatpush1.msra.mxu0 0.0
    %386 = vmatprep.subr.mxu0 0.0
    %387 = vmatpush1.msra.mxu0 0.0
    %388 = vmatprep.subr.mxu0 0.0
    %389 = vmatpush1.msra.mxu0 0.0
    %390 = vmatprep.subr.mxu0 0.0
    %391 = vmatpush1.msra.mxu0 0.0
    %392 = vmatprep.subr.mxu0 0.0
    %393 = vmatpush1.msra.mxu0 0.0
    %394 = vmatprep.subr.mxu0 0.0
    %395 = vmatpush1.msra.mxu0 0.0
    %396 = vmatprep.subr.mxu0 0.0
    %397 = vmatpush1.msra.mxu0 0.0
    %398 = vmatprep.subr.mxu0 0.0
    %399 = vmatpush1.msra.mxu0 0.0
    %400 = vmatprep.mubr.f32.mxu0 0.0
    %401 = vmatmul.mubr.f32.gmra.mrb[0].mxu0 %v334
    %v402 = vpop.f32.mrb[0].mxu0
    %v403 = vadd.f32 0.0, %v402
    %v404 = vpop.f32.mrb[0].mxu0
    %405 = vdwg.mxu0
    %v406 = vsel %vm85, %v403, 0.0
    %v407 = vrot.slane %v406, 4
    %v408 = vadd.f32 %v406, %v407
    %v409 = vrot.slane %v408, 2
    %v410 = vadd.f32 %v408, %v409
    %v411 = vrot.slane %v410, 1
    %v412 = vadd.f32 %v410, %v411
    %v413 = vmul.f32 %v412, %v165
    %v414 = vsub.f32 %v403, %v413
    %v415 = vmul.f32 %v414, %v414
    %v416 = vsel %vm85, %v415, 0.0
    %v417 = vrot.slane %v416, 4
    %v418 = vadd.f32 %v416, %v417
    %v419 = vrot.slane %v418, 2
    %v420 = vadd.f32 %v418, %v419
    %v421 = vrot.slane %v420, 1
    %v422 = vadd.f32 %v420, %v421
    %v423 = vmul.f32 %v422, %v165
    %v424 = vadd.f32 %v423, 1e-05
    %v425 = vrsqrt.pop %v424
    %v426 = vmul.f32 %v331, %v425
    %v427 = vmul.f32 %v413, %v426
    %v428 = vsub.f32 %v332, %v427
    %v430 = vlaneseq
    %v431 = vshrl.u32 %v430, 7
    %v432 = vsub.s32 0, %v431
    %v433 = vrot.slane %v426, %v432
    %v435 = vmul.f32 %v403, %v433
    %v437 = vlaneseq
    %v438 = vshrl.u32 %v437, 7
    %v439 = vsub.s32 0, %v438
    %v440 = vrot.slane %v428, %v439
    %v442 = vadd.f32 %v435, %v440
    %v443 = vmax.f32 %v442, 0.0
    %v444 = vld [vmem:[%s10] sm:$0xff]
    %v445 = vld [vmem:[%s10 + $0x8] sm:$0xff]
    %v446 = vld [vmem:[%s10 + $0x10] sm:$0xff]
    %v447 = vld [vmem:[%s10 + $0x18] sm:$0xff]
    %v448 = vld [vmem:[%s11] sm:$0x1]
    %v450 = vlaneseq
    %v451 = vshrl.u32 %v450, 7
    %v452 = vsub.s32 0, %v451
    %v453 = vrot.slane %v448, %v452
    %v456 = vsel %vm85, %v443, 0
    %458 = vmatprep.subr.mxu0 0.0
    %459 = vmatpush1.msra.mxu0 %v444
    %460 = vmatprep.subr.mxu0 0.0
    %461 = vmatpush1.msra.mxu0 %v445
    %462 = vmatprep.subr.mxu0 0.0
    %463 = vmatpush1.msra.mxu0 %v446
    %464 = vmatprep.subr.mxu0 0.0
    %465 = vmatpush1.msra.mxu0 %v447
    %466 = vmatprep.subr.mxu0 0.0
    %467 = vmatpush1.msra.mxu0 0.0
    %468 = vmatprep.subr.mxu0 0.0
    %469 = vmatpush1.msra.mxu0 0.0
    %470 = vmatprep.subr.mxu0 0.0
    %471 = vmatpush1.msra.mxu0 0.0
    %472 = vmatprep.subr.mxu0 0.0
    %473 = vmatpush1.msra.mxu0 0.0
    %474 = vmatprep.subr.mxu0 0.0
    %475 = vmatpush1.msra.mxu0 0.0
    %476 = vmatprep.subr.mxu0 0.0
    %477 = vmatpush1.msra.mxu0 0.0
    %478 = vmatprep.subr.mxu0 0.0
    %479 = vmatpush1.msra.mxu0 0.0
    %480 = vmatprep.subr.mxu0 0.0
    %481 = vmatpush1.msra.mxu0 0.0
    %482 = vmatprep.subr.mxu0 0.0
    %483 = vmatpush1.msra.mxu0 0.0
    %484 = vmatprep.subr.mxu0 0.0
    %485 = vmatpush1.msra.mxu0 0.0
    %486 = vmatprep.subr.mxu0 0.0
    %487 = vmatpush1.msra.mxu0 0.0
    %488 = vmatprep.subr.mxu0 0.0
    %489 = vmatpush1.msra.mxu0 0.0
    %490 = vmatprep.subr.mxu0 0.0
    %491 = vmatpush1.msra.mxu0 0.0
    %492 = vmatprep.subr.mxu0 0.0
    %493 = vmatpush1.msra.mxu0 0.0
    %494 = vmatprep.subr.mxu0 0.0
    %495 = vmatpush1.msra.mxu0 0.0
    %496 = vmatprep.subr.mxu0 0.0
    %497 = vmatpush1.msra.mxu0 0.0
    %498 = vmatprep.subr.mxu0 0.0
    %499 = vmatpush1.msra.mxu0 0.0
    %500 = vmatprep.subr.mxu0 0.0
    %501 = vmatpush1.msra.mxu0 0.0
    %502 = vmatprep.subr.mxu0 0.0
    %503 = vmatpush1.msra.mxu0 0.0
    %504 = vmatprep.subr.mxu0 0.0
    %505 = vmatpush1.msra.mxu0 0.0
    %506 = vmatprep.subr.mxu0 0.0
    %507 = vmatpush1.msra.mxu0 0.0
    %508 = vmatprep.subr.mxu0 0.0
    %509 = vmatpush1.msra.mxu0 0.0
    %510 = vmatprep.subr.mxu0 0.0
    %511 = vmatpush1.msra.mxu0 0.0
    %512 = vmatprep.subr.mxu0 0.0
    %513 = vmatpush1.msra.mxu0 0.0
    %514 = vmatprep.subr.mxu0 0.0
    %515 = vmatpush1.msra.mxu0 0.0
    %516 = vmatprep.subr.mxu0 0.0
    %517 = vmatpush1.msra.mxu0 0.0
    %518 = vmatprep.subr.mxu0 0.0
    %519 = vmatpush1.msra.mxu0 0.0
    %520 = vmatprep.subr.mxu0 0.0
    %521 = vmatpush1.msra.mxu0 0.0
    %522 = vmatprep.mubr.f32.mxu0 0.0
    %523 = vmatmul.mubr.f32.gmra.mrb[0].mxu0 %v456
    %v524 = vpop.f32.mrb[0].mxu0
    %v525 = vadd.f32 %v453, %v524
    %v526 = vpop.f32.mrb[0].mxu0
    %527 = vdwg.mxu0
    %vm528 = vcmask 130048
    %529 = vst.msk [vmem:[#allocation2] sm:$0xff] %vm528, %v525
    %v530 = vld [vmem:[%s12] sm:$0xff]
    %v531 = vld [vmem:[%s12 + $0x8] sm:$0xff]
    %v532 = vld [vmem:[%s13] sm:$0x1]
    %v533 = vld [vmem:[%s14] sm:$0x1]
    %v535 = vsel %vm528, %v525, 0
    %537 = vmatprep.subr.mxu0 0.0
    %538 = vmatpush1.msra.mxu0 %v530
    %539 = vmatprep.subr.mxu0 0.0
    %540 = vmatpush1.msra.mxu0 %v531
    %541 = vmatprep.subr.mxu0 0.0
    %542 = vmatpush1.msra.mxu0 0.0
    %543 = vmatprep.subr.mxu0 0.0
    %544 = vmatpush1.msra.mxu0 0.0
    %545 = vmatprep.subr.mxu0 0.0
    %546 = vmatpush1.msra.mxu0 0.0
    %547 = vmatprep.subr.mxu0 0.0
    %548 = vmatpush1.msra.mxu0 0.0
    %549 = vmatprep.subr.mxu0 0.0
    %550 = vmatpush1.msra.mxu0 0.0
    %551 = vmatprep.subr.mxu0 0.0
    %552 = vmatpush1.msra.mxu0 0.0
    %553 = vmatprep.subr.mxu0 0.0
    %554 = vmatpush1.msra.mxu0 0.0
    %555 = vmatprep.subr.mxu0 0.0
    %556 = vmatpush1.msra.mxu0 0.0
    %557 = vmatprep.subr.mxu0 0.0
    %558 = vmatpush1.msra.mxu0 0.0
    %559 = vmatprep.subr.mxu0 0.0
    %560 = vmatpush1.msra.mxu0 0.0
    %561 = vmatprep.subr.mxu0 0.0
    %562 = vmatpush1.msra.mxu0 0.0
    %563 = vmatprep.subr.mxu0 0.0
    %564 = vmatpush1.msra.mxu0 0.0
    %565 = vmatprep.subr.mxu0 0.0
    %566 = vmatpush1.msra.mxu0 0.0
    %567 = vmatprep.subr.mxu0 0.0
    %568 = vmatpush1.msra.mxu0 0.0
    %569 = vmatprep.subr.mxu0 0.0
    %570 = vmatpush1.msra.mxu0 0.0
    %571 = vmatprep.subr.mxu0 0.0
    %572 = vmatpush1.msra.mxu0 0.0
    %573 = vmatprep.subr.mxu0 0.0
    %574 = vmatpush1.msra.mxu0 0.0
    %575 = vmatprep.subr.mxu0 0.0
    %576 = vmatpush1.msra.mxu0 0.0
    %577 = vmatprep.subr.mxu0 0.0
    %578 = vmatpush1.msra.mxu0 0.0
    %579 = vmatprep.subr.mxu0 0.0
    %580 = vmatpush1.msra.mxu0 0.0
    %581 = vmatprep.subr.mxu0 0.0
    %582 = vmatpush1.msra.mxu0 0.0
    %583 = vmatprep.subr.mxu0 0.0
    %584 = vmatpush1.msra.mxu0 0.0
    %585 = vmatprep.subr.mxu0 0.0
    %586 = vmatpush1.msra.mxu0 0.0
    %587 = vmatprep.subr.mxu0 0.0
    %588 = vmatpush1.msra.mxu0 0.0
    %589 = vmatprep.subr.mxu0 0.0
    %590 = vmatpush1.msra.mxu0 0.0
    %591 = vmatprep.subr.mxu0 0.0
    %592 = vmatpush1.msra.mxu0 0.0
    %593 = vmatprep.subr.mxu0 0.0
    %594 = vmatpush1.msra.mxu0 0.0
    %595 = vmatprep.subr.mxu0 0.0
    %596 = vmatpush1.msra.mxu0 0.0
    %597 = vmatprep.subr.mxu0 0.0
    %598 = vmatpush1.msra.mxu0 0.0
    %599 = vmatprep.subr.mxu0 0.0
    %600 = vmatpush1.msra.mxu0 0.0
    %601 = vmatprep.mubr.f32.mxu0 0.0
    %602 = vmatmul.mubr.f32.gmra.mrb[0].mxu0 %v535
    %v603 = vpop.f32.mrb[0].mxu0
    %v604 = vadd.f32 0.0, %v603
    %v605 = vpop.f32.mrb[0].mxu0
    %606 = vdwg.mxu0
    %v607 = vsel %vm85, %v604, 0.0
    %v608 = vrot.slane %v607, 4
    %v609 = vadd.f32 %v607, %v608
    %v610 = vrot.slane %v609, 2
    %v611 = vadd.f32 %v609, %v610
    %v612 = vrot.slane %v611, 1
    %v613 = vadd.f32 %v611, %v612
    %v614 = vmul.f32 %v613, %v165
    %v615 = vsub.f32 %v604, %v614
    %v616 = vmul.f32 %v615, %v615
    %v617 = vsel %vm85, %v616, 0.0
    %v618 = vrot.slane %v617, 4
    %v619 = vadd.f32 %v617, %v618
    %v620 = vrot.slane %v619, 2
    %v621 = vadd.f32 %v619, %v620
    %v622 = vrot.slane %v621, 1
    %v623 = vadd.f32 %v621, %v622
    %v624 = vmul.f32 %v623, %v165
    %v625 = vadd.f32 %v624, 1e-05
    %v626 = vrsqrt.pop %v625
    %v627 = vmul.f32 %v532, %v626
    %v628 = vmul.f32 %v614, %v627
    %v629 = vsub.f32 %v533, %v628
    %v631 = vlaneseq
    %v632 = vshrl.u32 %v631, 7
    %v633 = vsub.s32 0, %v632
    %v634 = vrot.slane %v627, %v633
    %v636 = vmul.f32 %v604, %v634
    %v638 = vlaneseq
    %v639 = vshrl.u32 %v638, 7
    %v640 = vsub.s32 0, %v639
    %v641 = vrot.slane %v629, %v640
    %v643 = vadd.f32 %v636, %v641
    %v644 = vmax.f32 %v643, 0.0
    %v645 = vld [vmem:[%s15] sm:$0xff]
    %v646 = vld [vmem:[%s15 + $0x8] sm:$0xff]
    %v647 = vld [vmem:[%s15 + $0x10] sm:$0xff]
    %v648 = vld [vmem:[%s15 + $0x18] sm:$0xff]
    %v649 = vld [vmem:[%s16] sm:$0x1]
    %v650 = vld [vmem:[%s17] sm:$0x1]
    %v652 = vsel %vm85, %v644, 0
    %654 = vmatprep.subr.mxu0 0.0
    %655 = vmatpush1.msra.mxu0 %v645
    %656 = vmatprep.subr.mxu0 0.0
    %657 = vmatpush1.msra.mxu0 %v646
    %658 = vmatprep.subr.mxu0 0.0
    %659 = vmatpush1.msra.mxu0 %v647
    %660 = vmatprep.subr.mxu0 0.0
    %661 = vmatpush1.msra.mxu0 %v648
    %662 = vmatprep.subr.mxu0 0.0
    %663 = vmatpush1.msra.mxu0 0.0
    %664 = vmatprep.subr.mxu0 0.0
    %665 = vmatpush1.msra.mxu0 0.0
    %666 = vmatprep.subr.mxu0 0.0
    %667 = vmatpush1.msra.mxu0 0.0
    %668 = vmatprep.subr.mxu0 0.0
    %669 = vmatpush1.msra.mxu0 0.0
    %670 = vmatprep.subr.mxu0 0.0
    %671 = vmatpush1.msra.mxu0 0.0
    %672 = vmatprep.subr.mxu0 0.0
    %673 = vmatpush1.msra.mxu0 0.0
    %674 = vmatprep.subr.mxu0 0.0
    %675 = vmatpush1.msra.mxu0 0.0
    %676 = vmatprep.subr.mxu0 0.0
    %677 = vmatpush1.msra.mxu0 0.0
    %678 = vmatprep.subr.mxu0 0.0
    %679 = vmatpush1.msra.mxu0 0.0
    %680 = vmatprep.subr.mxu0 0.0
    %681 = vmatpush1.msra.mxu0 0.0
    %682 = vmatprep.subr.mxu0 0.0
    %683 = vmatpush1.msra.mxu0 0.0
    %684 = vmatprep.subr.mxu0 0.0
    %685 = vmatpush1.msra.mxu0 0.0
    %686 = vmatprep.subr.mxu0 0.0
    %687 = vmatpush1.msra.mxu0 0.0
    %688 = vmatprep.subr.mxu0 0.0
    %689 = vmatpush1.msra.mxu0 0.0
    %690 = vmatprep.subr.mxu0 0.0
    %691 = vmatpush1.msra.mxu0 0.0
    %692 = vmatprep.subr.mxu0 0.0
    %693 = vmatpush1.msra.mxu0 0.0
    %694 = vmatprep.subr.mxu0 0.0
    %695 = vmatpush1.msra.mxu0 0.0
    %696 = vmatprep.subr.mxu0 0.0
    %697 = vmatpush1.msra.mxu0 0.0
    %698 = vmatprep.subr.mxu0 0.0
    %699 = vmatpush1.msra.mxu0 0.0
    %700 = vmatprep.subr.mxu0 0.0
    %701 = vmatpush1.msra.mxu0 0.0
    %702 = vmatprep.subr.mxu0 0.0
    %703 = vmatpush1.msra.mxu0 0.0
    %704 = vmatprep.subr.mxu0 0.0
    %705 = vmatpush1.msra.mxu0 0.0
    %706 = vmatprep.subr.mxu0 0.0
    %707 = vmatpush1.msra.mxu0 0.0
    %708 = vmatprep.subr.mxu0 0.0
    %709 = vmatpush1.msra.mxu0 0.0
    %710 = vmatprep.subr.mxu0 0.0
    %711 = vmatpush1.msra.mxu0 0.0
    %712 = vmatprep.subr.mxu0 0.0
    %713 = vmatpush1.msra.mxu0 0.0
    %714 = vmatprep.subr.mxu0 0.0
    %715 = vmatpush1.msra.mxu0 0.0
    %716 = vmatprep.subr.mxu0 0.0
    %717 = vmatpush1.msra.mxu0 0.0
    %718 = vmatprep.mubr.f32.mxu0 0.0
    %719 = vmatmul.mubr.f32.gmra.mrb[0].mxu0 %v652
    %v720 = vpop.f32.mrb[0].mxu0
    %v721 = vadd.f32 0.0, %v720
    %v722 = vpop.f32.mrb[0].mxu0
    %723 = vdwg.mxu0
    %v724 = vsel %vm284, %v721, 0.0
    %v725 = vrot.slane %v724, 4
    %v726 = vadd.f32 %v724, %v725
    %v727 = vrot.slane %v726, 2
    %v728 = vadd.f32 %v726, %v727
    %v729 = vrot.slane %v728, 1
    %v730 = vadd.f32 %v728, %v729
    %v731 = vmul.f32 %v730, %v165
    %v732 = vsub.f32 %v721, %v731
    %v733 = vmul.f32 %v732, %v732
    %v734 = vsel %vm284, %v733, 0.0
    %v735 = vrot.slane %v734, 4
    %v736 = vadd.f32 %v734, %v735
    %v737 = vrot.slane %v736, 2
    %v738 = vadd.f32 %v736, %v737
    %v739 = vrot.slane %v738, 1
    %v740 = vadd.f32 %v738, %v739
    %v741 = vmul.f32 %v740, %v165
    %v742 = vadd.f32 %v741, 1e-05
    %v743 = vrsqrt.pop %v742
    %v744 = vmul.f32 %v649, %v743
    %v745 = vmul.f32 %v731, %v744
    %v746 = vsub.f32 %v650, %v745
    %v748 = vlaneseq
    %v749 = vshrl.u32 %v748, 7
    %v750 = vsub.s32 0, %v749
    %v751 = vrot.slane %v744, %v750
    %v753 = vmul.f32 %v721, %v751
    %v755 = vlaneseq
    %v756 = vshrl.u32 %v755, 7
    %v757 = vsub.s32 0, %v756
    %v758 = vrot.slane %v746, %v757
    %v760 = vadd.f32 %v753, %v758
    %v761 = vmax.f32 %v760, 0.0
    %v762 = vld [vmem:[%s18] sm:$0xff]
    %v763 = vld [vmem:[%s18 + $0x8] sm:$0xff]
    %v764 = vld [vmem:[%s18 + $0x10] sm:$0xff]
    %v765 = vld [vmem:[%s18 + $0x18] sm:$0xff]
    %v766 = vld [vmem:[%s18 + $0x20] sm:$0xff]
    %v767 = vld [vmem:[%s18 + $0x28] sm:$0xff]
    %v768 = vld [vmem:[%s18 + $0x30] sm:$0xff]
    %v769 = vld [vmem:[%s18 + $0x38] sm:$0xff]
    %v770 = vld [vmem:[%s19] sm:$0x1]
    %v771 = vld [vmem:[%s20] sm:$0x1]
    %v773 = vsel %vm284, %v761, 0
    %775 = vmatprep.subr.mxu0 0.0
    %776 = vmatpush1.msra.mxu0 %v762
    %777 = vmatprep.subr.mxu0 0.0
    %778 = vmatpush1.msra.mxu0 %v763
    %779 = vmatprep.subr.mxu0 0.0
    %780 = vmatpush1.msra.mxu0 %v764
    %781 = vmatprep.subr.mxu0 0.0
    %782 = vmatpush1.msra.mxu0 %v765
    %783 = vmatprep.subr.mxu0 0.0
    %784 = vmatpush1.msra.mxu0 %v766
    %785 = vmatprep.subr.mxu0 0.0
    %786 = vmatpush1.msra.mxu0 %v767
    %787 = vmatprep.subr.mxu0 0.0
    %788 = vmatpush1.msra.mxu0 %v768
    %789 = vmatprep.subr.mxu0 0.0
    %790 = vmatpush1.msra.mxu0 %v769
    %791 = vmatprep.subr.mxu0 0.0
    %792 = vmatpush1.msra.mxu0 0.0
    %793 = vmatprep.subr.mxu0 0.0
    %794 = vmatpush1.msra.mxu0 0.0
    %795 = vmatprep.subr.mxu0 0.0
    %796 = vmatpush1.msra.mxu0 0.0
    %797 = vmatprep.subr.mxu0 0.0
    %798 = vmatpush1.msra.mxu0 0.0
    %799 = vmatprep.subr.mxu0 0.0
    %800 = vmatpush1.msra.mxu0 0.0
    %801 = vmatprep.subr.mxu0 0.0
    %802 = vmatpush1.msra.mxu0 0.0
    %803 = vmatprep.subr.mxu0 0.0
    %804 = vmatpush1.msra.mxu0 0.0
    %805 = vmatprep.subr.mxu0 0.0
    %806 = vmatpush1.msra.mxu0 0.0
    %807 = vmatprep.subr.mxu0 0.0
    %808 = vmatpush1.msra.mxu0 0.0
    %809 = vmatprep.subr.mxu0 0.0
    %810 = vmatpush1.msra.mxu0 0.0
    %811 = vmatprep.subr.mxu0 0.0
    %812 = vmatpush1.msra.mxu0 0.0
    %813 = vmatprep.subr.mxu0 0.0
    %814 = vmatpush1.msra.mxu0 0.0
    %815 = vmatprep.subr.mxu0 0.0
    %816 = vmatpush1.msra.mxu0 0.0
    %817 = vmatprep.subr.mxu0 0.0
    %818 = vmatpush1.msra.mxu0 0.0
    %819 = vmatprep.subr.mxu0 0.0
    %820 = vmatpush1.msra.mxu0 0.0
    %821 = vmatprep.subr.mxu0 0.0
    %822 = vmatpush1.msra.mxu0 0.0
    %823 = vmatprep.subr.mxu0 0.0
    %824 = vmatpush1.msra.mxu0 0.0
    %825 = vmatprep.subr.mxu0 0.0
    %826 = vmatpush1.msra.mxu0 0.0
    %827 = vmatprep.subr.mxu0 0.0
    %828 = vmatpush1.msra.mxu0 0.0
    %829 = vmatprep.subr.mxu0 0.0
    %830 = vmatpush1.msra.mxu0 0.0
    %831 = vmatprep.subr.mxu0 0.0
    %832 = vmatpush1.msra.mxu0 0.0
    %833 = vmatprep.subr.mxu0 0.0
    %834 = vmatpush1.msra.mxu0 0.0
    %835 = vmatprep.subr.mxu0 0.0
    %836 = vmatpush1.msra.mxu0 0.0
    %837 = vmatprep.subr.mxu0 0.0
    %838 = vmatpush1.msra.mxu0 0.0
    %839 = vmatprep.mubr.f32.mxu0 0.0
    %840 = vmatmul.mubr.f32.gmra.mrb[0].mxu0 %v773
    %v841 = vpop.f32.mrb[0].mxu0
    %v842 = vadd.f32 0.0, %v841
    %v843 = vpop.f32.mrb[0].mxu0
    %844 = vdwg.mxu0
    %v845 = vrot.slane %v842, 4
    %v846 = vadd.f32 %v842, %v845
    %v847 = vrot.slane %v846, 2
    %v848 = vadd.f32 %v846, %v847
    %v849 = vrot.slane %v848, 1
    %v850 = vadd.f32 %v848, %v849
    %v851 = vmul.f32 %v850, %v165
    %v852 = vsub.f32 %v842, %v851
    %v853 = vmul.f32 %v852, %v852
    %v854 = vrot.slane %v853, 4
    %v855 = vadd.f32 %v853, %v854
    %v856 = vrot.slane %v855, 2
    %v857 = vadd.f32 %v855, %v856
    %v858 = vrot.slane %v857, 1
    %v859 = vadd.f32 %v857, %v858
    %v860 = vmul.f32 %v859, %v165
    %v861 = vadd.f32 %v860, 1e-05
    %v862 = vrsqrt.pop %v861
    %v863 = vmul.f32 %v770, %v862
    %v864 = vmul.f32 %v851, %v863
    %v865 = vsub.f32 %v771, %v864
    %v867 = vlaneseq
    %v868 = vshrl.u32 %v867, 7
    %v869 = vsub.s32 0, %v868
    %v870 = vrot.slane %v863, %v869
    %v872 = vmul.f32 %v842, %v870
    %v874 = vlaneseq
    %v875 = vshrl.u32 %v874, 7
    %v876 = vsub.s32 0, %v875
    %v877 = vrot.slane %v865, %v876
    %v879 = vadd.f32 %v872, %v877
    %v880 = vmax.f32 %v879, 0.0
    %v881 = vld [vmem:[%s21] sm:$0xff]
    %v882 = vld [vmem:[%s21 + $0x8] sm:$0xff]
    %v883 = vld [vmem:[%s21 + $0x10] sm:$0xff]
    %v884 = vld [vmem:[%s21 + $0x18] sm:$0xff]
    %v885 = vld [vmem:[%s21 + $0x20] sm:$0xff]
    %v886 = vld [vmem:[%s21 + $0x28] sm:$0xff]
    %v887 = vld [vmem:[%s21 + $0x30] sm:$0xff]
    %v888 = vld [vmem:[%s21 + $0x38] sm:$0xff]
    %v889 = vld [vmem:[%s21 + $0x40] sm:$0xff]
    %v890 = vld [vmem:[%s21 + $0x48] sm:$0xff]
    %v891 = vld [vmem:[%s21 + $0x50] sm:$0xff]
    %v892 = vld [vmem:[%s21 + $0x58] sm:$0xff]
    %v893 = vld [vmem:[%s21 + $0x60] sm:$0xff]
    %v894 = vld [vmem:[%s21 + $0x68] sm:$0xff]
    %v895 = vld [vmem:[%s21 + $0x70] sm:$0xff]
    %v896 = vld [vmem:[%s21 + $0x78] sm:$0xff]
    %v897 = vld [vmem:[%s22] sm:$0x1]
    %v899 = vlaneseq
    %v900 = vshrl.u32 %v899, 7
    %v901 = vsub.s32 0, %v900
    %v902 = vrot.slane %v897, %v901
    %904 = vmatprep.subr.mxu0 0.0
    %905 = vmatpush1.msra.mxu0 %v881
    %906 = vmatprep.subr.mxu0 0.0
    %907 = vmatpush1.msra.mxu0 %v882
    %908 = vmatprep.subr.mxu0 0.0
    %909 = vmatpush1.msra.mxu0 %v883
    %910 = vmatprep.subr.mxu0 0.0
    %911 = vmatpush1.msra.mxu0 %v884
    %912 = vmatprep.subr.mxu0 0.0
    %913 = vmatpush1.msra.mxu0 %v885
    %914 = vmatprep.subr.mxu0 0.0
    %915 = vmatpush1.msra.mxu0 %v886
    %916 = vmatprep.subr.mxu0 0.0
    %917 = vmatpush1.msra.mxu0 %v887
    %918 = vmatprep.subr.mxu0 0.0
    %919 = vmatpush1.msra.mxu0 %v888
    %920 = vmatprep.subr.mxu0 0.0
    %921 = vmatpush1.msra.mxu0 %v889
    %922 = vmatprep.subr.mxu0 0.0
    %923 = vmatpush1.msra.mxu0 %v890
    %924 = vmatprep.subr.mxu0 0.0
    %925 = vmatpush1.msra.mxu0 %v891
    %926 = vmatprep.subr.mxu0 0.0
    %927 = vmatpush1.msra.mxu0 %v892
    %928 = vmatprep.subr.mxu0 0.0
    %929 = vmatpush1.msra.mxu0 %v893
    %930 = vmatprep.subr.mxu0 0.0
    %931 = vmatpush1.msra.mxu0 %v894
    %932 = vmatprep.subr.mxu0 0.0
    %933 = vmatpush1.msra.mxu0 %v895
    %934 = vmatprep.subr.mxu0 0.0
    %935 = vmatpush1.msra.mxu0 %v896
    %936 = vmatprep.subr.mxu0 0.0
    %937 = vmatpush1.msra.mxu0 0.0
    %938 = vmatprep.subr.mxu0 0.0
    %939 = vmatpush1.msra.mxu0 0.0
    %940 = vmatprep.subr.mxu0 0.0
    %941 = vmatpush1.msra.mxu0 0.0
    %942 = vmatprep.subr.mxu0 0.0
    %943 = vmatpush1.msra.mxu0 0.0
    %944 = vmatprep.subr.mxu0 0.0
    %945 = vmatpush1.msra.mxu0 0.0
    %946 = vmatprep.subr.mxu0 0.0
    %947 = vmatpush1.msra.mxu0 0.0
    %948 = vmatprep.subr.mxu0 0.0
    %949 = vmatpush1.msra.mxu0 0.0
    %950 = vmatprep.subr.mxu0 0.0
    %951 = vmatpush1.msra.mxu0 0.0
    %952 = vmatprep.subr.mxu0 0.0
    %953 = vmatpush1.msra.mxu0 0.0
    %954 = vmatprep.subr.mxu0 0.0
    %955 = vmatpush1.msra.mxu0 0.0
    %956 = vmatprep.subr.mxu0 0.0
    %957 = vmatpush1.msra.mxu0 0.0
    %958 = vmatprep.subr.mxu0 0.0
    %959 = vmatpush1.msra.mxu0 0.0
    %960 = vmatprep.subr.mxu0 0.0
    %961 = vmatpush1.msra.mxu0 0.0
    %962 = vmatprep.subr.mxu0 0.0
    %963 = vmatpush1.msra.mxu0 0.0
    %964 = vmatprep.subr.mxu0 0.0
    %965 = vmatpush1.msra.mxu0 0.0
    %966 = vmatprep.subr.mxu0 0.0
    %967 = vmatpush1.msra.mxu0 0.0
    %968 = vmatprep.mubr.f32.mxu0 0.0
    %969 = vmatmul.mubr.f32.gmra.mrb[0].mxu0 %v880
    %v970 = vpop.f32.mrb[0].mxu0
    %v971 = vadd.f32 %v902, %v970
    %v972 = vpop.f32.mrb[0].mxu0
    %973 = vdwg.mxu0
    %v974 = vsub.f32 0.0, %v971
    %v975 = vmul.f32 %v974, 1.442695
    %v976 = vpow.pop %v975
    %v977 = vadd.f32 %v976, 1.0
    %v978 = vrcp.pop %v977
    %v979 = vmul.f32 1.0, %v978
    %980 = vst.msk [vmem:[#allocation4] sm:$0xff] %vm85, %v979
    // Predicated region
    $region94: #{tpu_custom_call.1} parent=1 // pred_check
      _
    $region95: #{tpu_custom_call.1} parent=1 // pred_check_branch
      %982 = sbr.rel (0) target = $region97
    $region96: #{tpu_custom_call.1} parent=1 // pred_region
      %s984 = ssub.s32 128, 128
      %985 = vsyncadd [#allocation3], %s984
      %s987 = sshll.u32 [#allocation2], 4
      %s988 = int_to_ptr.vmem [resolvable:$true] %s987
      %990 = dma.vmem_to_hbm [thread:$0]  %s988, 128, %s23, [#allocation3]
    $region97: #{tpu_custom_call.1} parent=1 // pred_fallthru
      _
    // Predicated region
    $region98: #{tpu_custom_call.1} parent=1 // pred_check
      _
    $region99: #{tpu_custom_call.1} parent=1 // pred_check_branch
      %992 = sbr.rel (0) target = $region101
    $region100: #{tpu_custom_call.1} parent=1 // pred_region
      %s994 = ssub.s32 128, 128
      %995 = vsyncadd [#allocation5], %s994
      %s997 = sshll.u32 [#allocation4], 4
      %s998 = int_to_ptr.vmem [resolvable:$true] %s997
      %1000 = dma.vmem_to_hbm [thread:$0]  %s998, 128, %s24, [#allocation5]
    $region101: #{tpu_custom_call.1} parent=1 // pred_fallthru
      _
    // Predicated region
    $region102: #{tpu_custom_call.1} parent=1 // pred_check
      _
    $region103: #{tpu_custom_call.1} parent=1 // pred_check_branch
      %1002 = sbr.rel (0) target = $region105
    $region104: #{tpu_custom_call.1} parent=1 // pred_region
      %1003 = dma.done [#allocation3], 128
    $region105: #{tpu_custom_call.1} parent=1 // pred_fallthru
      _
    // Predicated region
    $region106: #{tpu_custom_call.1} parent=1 // pred_check
      _
    $region107: #{tpu_custom_call.1} parent=1 // pred_check_branch
      %1005 = sbr.rel (0) target = $region109
    $region108: #{tpu_custom_call.1} parent=1 // pred_region
      %1006 = dma.done [#allocation5], 128
    $region109: #{tpu_custom_call.1} parent=1 // pred_fallthru
      _
    %1007 = vsyncpa [#allocation3], 1
    %1008 = vsyncpa [#allocation5], 1

</llo_original>
